<compile_context>
chip_gen: v5e
topology: v5e:2x2
jax: 0.10.0
libtpu: 0.0.40
codegen_flags: <defaults>
</compile_context>

<pallas_src>
import functools

import jax
import jax.numpy as jnp
from jax.experimental import pallas as pl
from jax.experimental.pallas import tpu as pltpu

WPT_DIM = 9
TRAJ_FEAT_DIM = 32
HID1 = 32
HID2 = 64
NEG_SLOPE = 0.01          # PyTorch LeakyReLU default
LANES = 128
PACK = LANES // TRAJ_FEAT_DIM   # 4 waypoints packed per 128-lane output row
ALIGN = PACK * 8                # 32 rows -> 8 packed rows (sublane multiple)
MATMUL_DTYPE = jnp.bfloat16


def _leaky_relu(x):
    # slope < 1  =>  leaky_relu(x) == max(x, slope*x)
    return jnp.maximum(x, NEG_SLOPE * x)


def wpt_encoder_kernel(x_ref, w1_ref, b1_ref, w2_ref, b2_ref, w3_ref, b3_ref, o_ref):
    # x_ref:  (prow, PACK*WPT_DIM)   -- 4 waypoints per 128-lane-dense row
    # w*_ref: block-diagonal packed weights (bf16), b*_ref: tiled biases (f32)
    x = x_ref[...].astype(MATMUL_DTYPE)
    h = jnp.dot(x, w1_ref[...], preferred_element_type=jnp.float32) + b1_ref[...]
    h = _leaky_relu(h)
    h = jnp.dot(h.astype(MATMUL_DTYPE), w2_ref[...],
                preferred_element_type=jnp.float32) + b2_ref[...]
    h = _leaky_relu(h)
    h = jnp.dot(h.astype(MATMUL_DTYPE), w3_ref[...],
                preferred_element_type=jnp.float32) + b3_ref[...]
    o_ref[...] = h.astype(o_ref.dtype)   # (prow, 128): full-width, lane-dense store


def _round_up(a, b):
    return ((a + b - 1) // b) * b


def pack_params(params, matmul_dtype=MATMUL_DTYPE):
    """One-time packing: block-diagonal bf16 weights, f32 tiled biases.

    [x0|x1|x2|x3] @ blkdiag(w,w,w,w) = [x0@w | x1@w | x2@w | x3@w]
    """
    w1, b1, w2, b2, w3, b3 = params
    eye = jnp.eye(PACK, dtype=jnp.float32)
    w1p = jnp.kron(eye, w1.astype(jnp.float32)).astype(matmul_dtype)  # (36, 128)
    w2p = jnp.kron(eye, w2.astype(jnp.float32)).astype(matmul_dtype)  # (128, 256)
    w3p = jnp.kron(eye, w3.astype(jnp.float32)).astype(matmul_dtype)  # (256, 128)
    b1p = jnp.tile(b1.reshape(1, -1).astype(jnp.float32), (1, PACK))  # (1, 128)
    b2p = jnp.tile(b2.reshape(1, -1).astype(jnp.float32), (1, PACK))  # (1, 256)
    b3p = jnp.tile(b3.reshape(1, -1).astype(jnp.float32), (1, PACK))  # (1, 128)
    return (w1p, b1p, w2p, b2p, w3p, b3p)


@functools.partial(jax.jit, static_argnames=("row_tile",))
def wpt_encoder_forward(x, packed_params, row_tile=8192):
    """x: (..., WPT_DIM) -> (..., TRAJ_FEAT_DIM). packed_params from pack_params()."""
    w1p, b1p, w2p, b2p, w3p, b3p = packed_params
    lead_shape = x.shape[:-1]
    n = 1
    for d in lead_shape:
        n *= d
    x2 = x.reshape(n, WPT_DIM)

    # Pad ONLY to the 32-row alignment (<= 31 extra rows; no full-tile pad copy).
    n_align = _round_up(max(n, 1), ALIGN)
    if n_align != n:
        x2 = jnp.pad(x2, ((0, n_align - n), (0, 0)))

    # Row tile: user request rounded to the 32-row alignment, capped so large inputs
    # keep >= 4 grid steps (both v7x TensorCores busy) and never exceeding the input.
    req = max(ALIGN, _round_up(int(row_tile), ALIGN))
    cap = max(ALIGN, _round_up(pl.cdiv(n_align, 4), ALIGN))
    rt = min(req, cap, n_align)

    # Lane-dense packing: (n_align, 9) -> (n_align/4, 36) is a free row-major view.
    m = n_align // PACK
    prow = rt // PACK                      # multiple of 8
    xp = x2.reshape(m, PACK * WPT_DIM)

    grid = (pl.cdiv(m, prow),)             # trailing partial block is masked by Pallas

    # VMEM budget: double-buffered x/out tiles + f32 intermediates + resident weights.
    itemsize = x2.dtype.itemsize
    est = (2 * prow * (PACK * WPT_DIM * itemsize + LANES * itemsize)
           + prow * (PACK * HID1 + PACK * HID2) * 4
           + 4 * (PACK * WPT_DIM * PACK * HID1
                  + PACK * HID1 * PACK * HID2
                  + PACK * HID2 * LANES))
    vmem_limit = int(min(max(2 * est, 32 << 20), 48 << 20))  # headroom, < v7x 64 MiB

    out = pl.pallas_call(
        wpt_encoder_kernel,
        out_shape=jax.ShapeDtypeStruct((m, LANES), x.dtype),
        grid_spec=pltpu.PrefetchScalarGridSpec(
            num_scalar_prefetch=0,
            grid=grid,
            in_specs=[
                pl.BlockSpec((prow, PACK * WPT_DIM), lambda i: (i, 0)),            # x tile
                pl.BlockSpec((PACK * WPT_DIM, PACK * HID1), lambda i: (0, 0)),     # w1 packed
                pl.BlockSpec((1, PACK * HID1), lambda i: (0, 0)),                  # b1 packed
                pl.BlockSpec((PACK * HID1, PACK * HID2), lambda i: (0, 0)),        # w2 packed
                pl.BlockSpec((1, PACK * HID2), lambda i: (0, 0)),                  # b2 packed
                pl.BlockSpec((PACK * HID2, PACK * TRAJ_FEAT_DIM), lambda i: (0, 0)),  # w3 packed
                pl.BlockSpec((1, PACK * TRAJ_FEAT_DIM), lambda i: (0, 0)),         # b3 packed
            ],
            out_specs=pl.BlockSpec((prow, LANES), lambda i: (i, 0)),
        ),
        compiler_params=pltpu.CompilerParams(
            dimension_semantics=("parallel",),   # shard grid steps across TCs (v7x)
            vmem_limit_bytes=vmem_limit,
        ),
    )(xp, w1p, b1p, w2p, b2p, w3p, b3p)

    # (m, 128) -> (n_align, 32) is again a free row-major view; drop padded rows.
    out = out.reshape(n_align, TRAJ_FEAT_DIM)[:n]
    return out.reshape(*lead_shape, TRAJ_FEAT_DIM)


def init_params(key):
    """Deterministic synthetic weights matching nn.Linear shapes (pre-transposed)."""
    ks = jax.random.split(key, 6)

    def lin(kw, kb, fan_in, fan_out):
        # mimic PyTorch default uniform(-1/sqrt(fan_in), 1/sqrt(fan_in))
        bound = 1.0 / jnp.sqrt(jnp.asarray(fan_in, jnp.float32))
        w = jax.random.uniform(kw, (fan_in, fan_out), jnp.float32, -bound, bound)
        b = jax.random.uniform(kb, (1, fan_out), jnp.float32, -bound, bound)
        return w, b

    w1, b1 = lin(ks[0], ks[1], WPT_DIM, HID1)
    w2, b2 = lin(ks[2], ks[3], HID1, HID2)
    w3, b3 = lin(ks[4], ks[5], HID2, TRAJ_FEAT_DIM)
    return (w1, b1, w2, b2, w3, b3)


def reference_forward(x, params):
    w1, b1, w2, b2, w3, b3 = params
    h = x @ w1 + b1
    h = jnp.where(h > 0, h, NEG_SLOPE * h)
    h = h @ w2 + b2
    h = jnp.where(h > 0, h, NEG_SLOPE * h)
    return h @ w3 + b3


if __name__ == "__main__":
    key = jax.random.PRNGKey(0)
    k1, k2, k_p = jax.random.split(key, 3)

    params = init_params(k_p)
    packed = pack_params(params)   # one-time packing (outside the jitted forward)

    # Case 1: small shape consistent with the module: batch=2, seq=8 waypoints, wpt_dim=9
    x1 = jax.random.normal(k1, (2, 8, WPT_DIM), dtype=jnp.float32)
    out1 = jax.block_until_ready(wpt_encoder_forward(x1, packed))
    ref1 = reference_forward(x1.reshape(-1, WPT_DIM), params).reshape(2, 8, TRAJ_FEAT_DIM)
    assert out1.shape == (2, 8, TRAJ_FEAT_DIM), out1.shape
    err1 = float(jnp.max(jnp.abs(out1 - ref1)))
    assert jnp.allclose(out1, ref1, atol=2e-2, rtol=2e-2), err1

    # Case 2: unaligned row count (200 rows) -> exercises multi-step grid + masked
    # trailing partial block.
    x2 = jax.random.normal(k2, (5, 40, WPT_DIM), dtype=jnp.float32)
    out2 = jax.block_until_ready(wpt_encoder_forward(x2, packed))
    ref2 = reference_forward(x2.reshape(-1, WPT_DIM), params).reshape(5, 40, TRAJ_FEAT_DIM)
    assert out2.shape == (5, 40, TRAJ_FEAT_DIM), out2.shape
    err2 = float(jnp.max(jnp.abs(out2 - ref2)))
    assert jnp.allclose(out2, ref2, atol=2e-2, rtol=2e-2), err2

    print("KERNEL_OK")
</pallas_src>

<mosaic_0001>
module attributes {stable_mosaic.version = 11 : i64} {
  func.func @wpt_encoder_kernel(%arg0: i32, %arg1: memref<8x36xf32, #tpu.memory_space<vmem>>, %arg2: memref<36x128xbf16, #tpu.memory_space<vmem>>, %arg3: memref<1x128xf32, #tpu.memory_space<vmem>>, %arg4: memref<128x256xbf16, #tpu.memory_space<vmem>>, %arg5: memref<1x256xf32, #tpu.memory_space<vmem>>, %arg6: memref<256x128xbf16, #tpu.memory_space<vmem>>, %arg7: memref<1x128xf32, #tpu.memory_space<vmem>>, %arg8: memref<8x128xf32, #tpu.memory_space<vmem>>) attributes {dimension_semantics = [#tpu.dimension_semantics<parallel>], iteration_bounds = array<i64: 1>, scalar_prefetch = 0 : i64, scratch_operands = 0 : i64, tpu.core_type = #tpu.core_type<tc>, window_params = [{transform_indices = @transform_0, window_bounds = array<i64: 8, 36>}, {pipeline_mode = #tpu.pipeline_mode<synchronous>, transform_indices = @transform_1, window_bounds = array<i64: 36, 128>}, {pipeline_mode = #tpu.pipeline_mode<synchronous>, transform_indices = @transform_2, window_bounds = array<i64: 1, 128>}, {pipeline_mode = #tpu.pipeline_mode<synchronous>, transform_indices = @transform_3, window_bounds = array<i64: 128, 256>}, {pipeline_mode = #tpu.pipeline_mode<synchronous>, transform_indices = @transform_4, window_bounds = array<i64: 1, 256>}, {pipeline_mode = #tpu.pipeline_mode<synchronous>, transform_indices = @transform_5, window_bounds = array<i64: 256, 128>}, {pipeline_mode = #tpu.pipeline_mode<synchronous>, transform_indices = @transform_6, window_bounds = array<i64: 1, 128>}, {transform_indices = @transform_7, window_bounds = array<i64: 8, 128>}]} {
    %c0 = arith.constant 0 : index
    %c0_0 = arith.constant 0 : index
    %0 = vector.load %arg1[%c0, %c0_0] : memref<8x36xf32, #tpu.memory_space<vmem>>, vector<8x36xf32>
    %1 = arith.truncf %0 : vector<8x36xf32> to vector<8x36xbf16>
    %c0_1 = arith.constant 0 : index
    %c0_2 = arith.constant 0 : index
    %2 = vector.load %arg2[%c0_1, %c0_2] : memref<36x128xbf16, #tpu.memory_space<vmem>>, vector<36x128xbf16>
    %cst = arith.constant dense<0.000000e+00> : vector<8x128xf32>
    %3 = tpu.matmul %1, %2, %cst {dimension_numbers = #tpu.dot_dimension_numbers<[1], [0], [0], [1], [0, 0, 1, 1], [], []>} : vector<8x36xbf16>, vector<36x128xbf16>, vector<8x128xf32> -> vector<8x128xf32>
    %c0_3 = arith.constant 0 : index
    %c0_4 = arith.constant 0 : index
    %4 = vector.load %arg3[%c0_3, %c0_4] : memref<1x128xf32, #tpu.memory_space<vmem>>, vector<1x128xf32>
    %5 = vector.broadcast %4 : vector<1x128xf32> to vector<8x128xf32>
    %6 = arith.addf %3, %5 : vector<8x128xf32>
    %cst_5 = arith.constant 0.00999999977 : f32
    %7 = vector.broadcast %cst_5 : f32 to vector<8x128xf32>
    %8 = arith.mulf %7, %6 : vector<8x128xf32>
    %9 = arith.maximumf %6, %8 : vector<8x128xf32>
    %10 = arith.truncf %9 : vector<8x128xf32> to vector<8x128xbf16>
    %c0_6 = arith.constant 0 : index
    %c0_7 = arith.constant 0 : index
    %11 = vector.load %arg4[%c0_6, %c0_7] : memref<128x256xbf16, #tpu.memory_space<vmem>>, vector<128x256xbf16>
    %cst_8 = arith.constant dense<0.000000e+00> : vector<8x256xf32>
    %12 = tpu.matmul %10, %11, %cst_8 {dimension_numbers = #tpu.dot_dimension_numbers<[1], [0], [0], [1], [0, 0, 1, 1], [], []>} : vector<8x128xbf16>, vector<128x256xbf16>, vector<8x256xf32> -> vector<8x256xf32>
    %c0_9 = arith.constant 0 : index
    %c0_10 = arith.constant 0 : index
    %13 = vector.load %arg5[%c0_9, %c0_10] : memref<1x256xf32, #tpu.memory_space<vmem>>, vector<1x256xf32>
    %14 = vector.broadcast %13 : vector<1x256xf32> to vector<8x256xf32>
    %15 = arith.addf %12, %14 : vector<8x256xf32>
    %cst_11 = arith.constant 0.00999999977 : f32
    %16 = vector.broadcast %cst_11 : f32 to vector<8x256xf32>
    %17 = arith.mulf %16, %15 : vector<8x256xf32>
    %18 = arith.maximumf %15, %17 : vector<8x256xf32>
    %19 = arith.truncf %18 : vector<8x256xf32> to vector<8x256xbf16>
    %c0_12 = arith.constant 0 : index
    %c0_13 = arith.constant 0 : index
    %20 = vector.load %arg6[%c0_12, %c0_13] : memref<256x128xbf16, #tpu.memory_space<vmem>>, vector<256x128xbf16>
    %cst_14 = arith.constant dense<0.000000e+00> : vector<8x128xf32>
    %21 = tpu.matmul %19, %20, %cst_14 {dimension_numbers = #tpu.dot_dimension_numbers<[1], [0], [0], [1], [0, 0, 1, 1], [], []>} : vector<8x256xbf16>, vector<256x128xbf16>, vector<8x128xf32> -> vector<8x128xf32>
    %c0_15 = arith.constant 0 : index
    %c0_16 = arith.constant 0 : index
    %22 = vector.load %arg7[%c0_15, %c0_16] : memref<1x128xf32, #tpu.memory_space<vmem>>, vector<1x128xf32>
    %23 = vector.broadcast %22 : vector<1x128xf32> to vector<8x128xf32>
    %24 = arith.addf %21, %23 : vector<8x128xf32>
    %c0_17 = arith.constant 0 : index
    %c0_18 = arith.constant 0 : index
    %25 = vector.load %arg8[%c0_17, %c0_18] : memref<8x128xf32, #tpu.memory_space<vmem>>, vector<8x128xf32>
    tpu.vector_store %arg8[%c0_17, %c0_18], %24 {strides = array<i32>} : memref<8x128xf32, #tpu.memory_space<vmem>>, vector<8x128xf32>,
    return
  }
  func.func @transform_0(%arg0: i32) -> (i32, i32) {
    %c0_i32 = arith.constant 0 : i32
    %c0_i32_0 = arith.constant 0 : i32
    return %arg0, %c0_i32 : i32, i32
  }
  func.func @transform_1(%arg0: i32) -> (i32, i32) {
    %c0_i32 = arith.constant 0 : i32
    %c0_i32_0 = arith.constant 0 : i32
    %c0_i32_1 = arith.constant 0 : i32
    return %c0_i32, %c0_i32_0 : i32, i32
  }
  func.func @transform_2(%arg0: i32) -> (i32, i32) {
    %c0_i32 = arith.constant 0 : i32
    %c0_i32_0 = arith.constant 0 : i32
    %c0_i32_1 = arith.constant 0 : i32
    return %c0_i32, %c0_i32_0 : i32, i32
  }
  func.func @transform_3(%arg0: i32) -> (i32, i32) {
    %c0_i32 = arith.constant 0 : i32
    %c0_i32_0 = arith.constant 0 : i32
    %c0_i32_1 = arith.constant 0 : i32
    return %c0_i32, %c0_i32_0 : i32, i32
  }
  func.func @transform_4(%arg0: i32) -> (i32, i32) {
    %c0_i32 = arith.constant 0 : i32
    %c0_i32_0 = arith.constant 0 : i32
    %c0_i32_1 = arith.constant 0 : i32
    return %c0_i32, %c0_i32_0 : i32, i32
  }
  func.func @transform_5(%arg0: i32) -> (i32, i32) {
    %c0_i32 = arith.constant 0 : i32
    %c0_i32_0 = arith.constant 0 : i32
    %c0_i32_1 = arith.constant 0 : i32
    return %c0_i32, %c0_i32_0 : i32, i32
  }
  func.func @transform_6(%arg0: i32) -> (i32, i32) {
    %c0_i32 = arith.constant 0 : i32
    %c0_i32_0 = arith.constant 0 : i32
    %c0_i32_1 = arith.constant 0 : i32
    return %c0_i32, %c0_i32_0 : i32, i32
  }
  func.func @transform_7(%arg0: i32) -> (i32, i32) {
    %c0_i32 = arith.constant 0 : i32
    %c0_i32_0 = arith.constant 0 : i32
    return %arg0, %c0_i32 : i32, i32
  }
}

</mosaic_0001>

<llo_original>
// kernel: wpt_encoder_forward.1
$region0: #{wpt_encoder_forward.1}
  #allocation0 [shape = 'u32[]', space=smem, size = 0x4, offset = 0x4, fixed_abs, tag = 'smem constant byte address 0x4 - core index']
  #allocation1 [shape = 'u32[72,128]{1,0:T(1,128)}', space=vmem, size = 0x9000, scoped, tag = 'internal scratch']
  %s0 = inlined_call_operand.vmem [shape: f32[8,36], index: 0, kind: input, shape index: {}]
  %s1 = inlined_call_operand.vmem [shape: bf16[36,128], index: 1, kind: input, shape index: {}]
  %s2 = inlined_call_operand.vmem [shape: f32[1,128], index: 2, kind: input, shape index: {}]
  %s3 = inlined_call_operand.hbm [shape: bf16[128,256], index: 3, kind: input, shape index: {}]
  %s4 = inlined_call_operand.vmem [shape: f32[1,256], index: 4, kind: input, shape index: {}]
  %s5 = inlined_call_operand.hbm [shape: bf16[256,128], index: 5, kind: input, shape index: {}]
  %s6 = inlined_call_operand.vmem [shape: f32[1,128], index: 6, kind: input, shape index: {}]
  %s7 = inlined_call_operand.vmem [shape: f32[8,128], index: 7, kind: output, shape index: {}]
  %s8 = sld [smem:[#allocation0]]
  $region46: #{wpt_encoder_forward.1} parent=0
    _
  %s10 = ssub.s32 1, %s8
  %s11 = scalar_select 0, %s10, %s8
  $region1: #{wpt_encoder_forward.1} parent=0
    #allocation2 [shape = 'u8[65536]{0}', space=vmem, size = 0x10000, scoped, tag = 'input window, operand 3, single buffered']
    #allocation3 [shape = 's32[1]{0}', space=sflag, size = 0x4, scoped, tag = 'scoped memory for wpt_encoder_forward.1']
    #allocation4 [shape = 'u8[65536]{0}', space=vmem, size = 0x10000, scoped, tag = 'input window, operand 5, single buffered']
    #allocation5 [shape = 's32[1]{0}', space=sflag, size = 0x4, scoped, tag = 'scoped memory for wpt_encoder_forward.1']
    %12 = vsyncpa [#allocation3], 0
    %13 = vsyncpa [#allocation5], 0
    // Predicated region
    $region2: #{wpt_encoder_forward.1} parent=1 // pred_check
      _
    $region3: #{wpt_encoder_forward.1} parent=1 // pred_check_branch
      %15 = sbr.rel (0) target = $region5
    $region4: #{wpt_encoder_forward.1} parent=1 // pred_region
      _
    $region5: #{wpt_encoder_forward.1} parent=1 // pred_fallthru
      _
    // Predicated region
    $region6: #{wpt_encoder_forward.1} parent=1 // pred_check
      _
    $region7: #{wpt_encoder_forward.1} parent=1 // pred_check_branch
      %17 = sbr.rel (0) target = $region9
    $region8: #{wpt_encoder_forward.1} parent=1 // pred_region
      _
    $region9: #{wpt_encoder_forward.1} parent=1 // pred_fallthru
      _
    // Predicated region
    $region10: #{wpt_encoder_forward.1} parent=1 // pred_check
      _
    $region11: #{wpt_encoder_forward.1} parent=1 // pred_check_branch
      %19 = sbr.rel (0) target = $region13
    $region12: #{wpt_encoder_forward.1} parent=1 // pred_region
      _
    $region13: #{wpt_encoder_forward.1} parent=1 // pred_fallthru
      _
    // Predicated region
    $region14: #{wpt_encoder_forward.1} parent=1 // pred_check
      _
    $region15: #{wpt_encoder_forward.1} parent=1 // pred_check_branch
      %21 = sbr.rel (0) target = $region17
    $region16: #{wpt_encoder_forward.1} parent=1 // pred_region
      %23 = vsyncadd [#allocation3], 0
      %s24 = sshll.u32 %s3, 4
      %s25 = int_to_ptr.hbm [resolvable:$true] %s24
      %s26 = sshll.u32 [#allocation2], 4
      %s27 = int_to_ptr.vmem [resolvable:$true] %s26
      %32 = dma.hbm_to_vmem [thread:$0]  %s25, 2048, %s27, [#allocation3], 128, 128, 8
    $region17: #{wpt_encoder_forward.1} parent=1 // pred_fallthru
      _
    // Predicated region
    $region18: #{wpt_encoder_forward.1} parent=1 // pred_check
      _
    $region19: #{wpt_encoder_forward.1} parent=1 // pred_check_branch
      %34 = sbr.rel (0) target = $region21
    $region20: #{wpt_encoder_forward.1} parent=1 // pred_region
      _
    $region21: #{wpt_encoder_forward.1} parent=1 // pred_fallthru
      _
    // Predicated region
    $region22: #{wpt_encoder_forward.1} parent=1 // pred_check
      _
    $region23: #{wpt_encoder_forward.1} parent=1 // pred_check_branch
      %36 = sbr.rel (0) target = $region25
    $region24: #{wpt_encoder_forward.1} parent=1 // pred_region
      %38 = vsyncadd [#allocation5], 0
      %s39 = sshll.u32 %s5, 4
      %s40 = int_to_ptr.hbm [resolvable:$true] %s39
      %s41 = sshll.u32 [#allocation4], 4
      %s42 = int_to_ptr.vmem [resolvable:$true] %s41
      %47 = dma.hbm_to_vmem [thread:$0]  %s40, 2048, %s42, [#allocation5], 64, 64, 4
    $region25: #{wpt_encoder_forward.1} parent=1 // pred_fallthru
      _
    // Predicated region
    $region26: #{wpt_encoder_forward.1} parent=1 // pred_check
      _
    $region27: #{wpt_encoder_forward.1} parent=1 // pred_check_branch
      %49 = sbr.rel (0) target = $region29
    $region28: #{wpt_encoder_forward.1} parent=1 // pred_region
      _
    $region29: #{wpt_encoder_forward.1} parent=1 // pred_fallthru
      _
    // Predicated region
    $region30: #{wpt_encoder_forward.1} parent=1 // pred_check
      _
    $region31: #{wpt_encoder_forward.1} parent=1 // pred_check_branch
      %51 = sbr.rel (0) target = $region33
    $region32: #{wpt_encoder_forward.1} parent=1 // pred_region
      %53 = dma.done [#allocation3], 2048
    $region33: #{wpt_encoder_forward.1} parent=1 // pred_fallthru
      _
    // Predicated region
    $region34: #{wpt_encoder_forward.1} parent=1 // pred_check
      _
    $region35: #{wpt_encoder_forward.1} parent=1 // pred_check_branch
      %55 = sbr.rel (0) target = $region37
    $region36: #{wpt_encoder_forward.1} parent=1 // pred_region
      %57 = dma.done [#allocation5], 2048
    $region37: #{wpt_encoder_forward.1} parent=1 // pred_fallthru
      _
    %v59 = vld [vmem:[%s0] sm:$0xff]
    %v60 = vpack.c.bf16 %v59, %v59
    %v61 = vld [vmem:[%s1] sm:$0xf]
    %v62 = vld [vmem:[%s1 + $0x4] sm:$0xf]
    %v63 = vld [vmem:[%s1 + $0x8] sm:$0xf]
    %v64 = vld [vmem:[%s1 + $0xc] sm:$0xf]
    %v65 = vld [vmem:[%s1 + $0x10] sm:$0x3]
    %v66 = vld [vmem:[%s2] sm:$0x1]
    %v68 = vperm.slane %v66, 0
    %v75 = vunpack.c.l.b16 %v61
    %v76 = vunpack.c.l.b16 %v62
    %v77 = vunpack.c.l.b16 %v63
    %v78 = vunpack.c.l.b16 %v64
    %v79 = vunpack.c.l.b16 %v65
    %v80 = vpack.c.b16 %v76, %v75
    %v81 = vpack.c.b16 %v78, %v77
    %v82 = vpack.c.b16 %v79, %v79
    %vm85 = vcmask 293888
    %v87 = vsel %vm85, %v60, 0
    %vm89 = vcmask 1041408
    %v91 = vsel %vm89, %v82, 0
    %93 = vmatpush.bf16.msra.mxu0 0
    %94 = vmatpush.bf16.msra.mxu0 0
    %95 = vmatpush.bf16.msra.mxu0 0
    %96 = vmatpush.bf16.msra.mxu0 0
    %97 = vmatpush.bf16.msra.mxu0 0
    %98 = vmatpush.bf16.msra.mxu0 %v91
    %99 = vmatpush.bf16.msra.mxu0 %v81
    %100 = vmatpush.bf16.msra.mxu0 %v80
    %101 = vmatmul.bf16.gmra.mxu0 %v87
    %v102 = vpop.f32.mrf.mxu0
    %v103 = vadd.f32 %v68, %v102
    %v104 = vpop.f32.mrf.mxu0
    %105 = vdwg.mxu0
    %v106 = vmul.f32 %v103, 0.01
    %v107 = vmax.f32 %v103, %v106
    %v108 = vpack.c.bf16 %v107, %v107
    %v109 = vld [vmem:[#allocation2] sm:$0xff]
    %v110 = vld [vmem:[#allocation2 + $0x8] sm:$0xff]
    %v111 = vld [vmem:[#allocation2 + $0x10] sm:$0xff]
    %v112 = vld [vmem:[#allocation2 + $0x18] sm:$0xff]
    %v113 = vld [vmem:[#allocation2 + $0x20] sm:$0xff]
    %v114 = vld [vmem:[#allocation2 + $0x28] sm:$0xff]
    %v115 = vld [vmem:[#allocation2 + $0x30] sm:$0xff]
    %v116 = vld [vmem:[#allocation2 + $0x38] sm:$0xff]
    %v117 = vld [vmem:[#allocation2 + $0x40] sm:$0xff]
    %v118 = vld [vmem:[#allocation2 + $0x48] sm:$0xff]
    %v119 = vld [vmem:[#allocation2 + $0x50] sm:$0xff]
    %v120 = vld [vmem:[#allocation2 + $0x58] sm:$0xff]
    %v121 = vld [vmem:[#allocation2 + $0x60] sm:$0xff]
    %v122 = vld [vmem:[#allocation2 + $0x68] sm:$0xff]
    %v123 = vld [vmem:[#allocation2 + $0x70] sm:$0xff]
    %v124 = vld [vmem:[#allocation2 + $0x78] sm:$0xff]
    %v125 = vld [vmem:[%s4] sm:$0x3]
    %v127 = vperm.slane %v125, 0
    %v128 = vperm.slane %v125, 1
    %v147 = vunpack.c.l.b16 %v109
    %v148 = vunpack.c.h.b16 %v109
    %v149 = vunpack.c.l.b16 %v110
    %v150 = vunpack.c.h.b16 %v110
    %v151 = vunpack.c.l.b16 %v111
    %v152 = vunpack.c.h.b16 %v111
    %v153 = vunpack.c.l.b16 %v112
    %v154 = vunpack.c.h.b16 %v112
    %v155 = vunpack.c.l.b16 %v113
    %v156 = vunpack.c.h.b16 %v113
    %v157 = vunpack.c.l.b16 %v114
    %v158 = vunpack.c.h.b16 %v114
    %v159 = vunpack.c.l.b16 %v115
    %v160 = vunpack.c.h.b16 %v115
    %v161 = vunpack.c.l.b16 %v116
    %v162 = vunpack.c.h.b16 %v116
    %v163 = vunpack.c.l.b16 %v117
    %v164 = vunpack.c.h.b16 %v117
    %v165 = vunpack.c.l.b16 %v118
    %v166 = vunpack.c.h.b16 %v118
    %v167 = vunpack.c.l.b16 %v119
    %v168 = vunpack.c.h.b16 %v119
    %v169 = vunpack.c.l.b16 %v120
    %v170 = vunpack.c.h.b16 %v120
    %v171 = vunpack.c.l.b16 %v121
    %v172 = vunpack.c.h.b16 %v121
    %v173 = vunpack.c.l.b16 %v122
    %v174 = vunpack.c.h.b16 %v122
    %v175 = vunpack.c.l.b16 %v123
    %v176 = vunpack.c.h.b16 %v123
    %v177 = vunpack.c.l.b16 %v124
    %v178 = vunpack.c.h.b16 %v124
    %v179 = vpack.c.b16 %v149, %v147
    %v180 = vpack.c.b16 %v150, %v148
    %v181 = vpack.c.b16 %v153, %v151
    %v182 = vpack.c.b16 %v154, %v152
    %v183 = vpack.c.b16 %v157, %v155
    %v184 = vpack.c.b16 %v158, %v156
    %v185 = vpack.c.b16 %v161, %v159
    %v186 = vpack.c.b16 %v162, %v160
    %v187 = vpack.c.b16 %v165, %v163
    %v188 = vpack.c.b16 %v166, %v164
    %v189 = vpack.c.b16 %v169, %v167
    %v190 = vpack.c.b16 %v170, %v168
    %v191 = vpack.c.b16 %v173, %v171
    %v192 = vpack.c.b16 %v174, %v172
    %v193 = vpack.c.b16 %v177, %v175
    %v194 = vpack.c.b16 %v178, %v176
    %211 = vmatpush.bf16.msra.mxu0 %v193
    %212 = vmatpush.bf16.msra.mxu0 %v191
    %213 = vmatpush.bf16.msra.mxu0 %v189
    %214 = vmatpush.bf16.msra.mxu0 %v187
    %215 = vmatpush.bf16.msra.mxu0 %v185
    %216 = vmatpush.bf16.msra.mxu0 %v183
    %217 = vmatpush.bf16.msra.mxu0 %v181
    %218 = vmatpush.bf16.msra.mxu0 %v179
    %219 = vmatmul.bf16.gmra.mxu0 %v108
    %v220 = vpop.f32.mrf.mxu0
    %v221 = vadd.f32 %v127, %v220
    %v222 = vpop.f32.mrf.mxu0
    %223 = vdwg.mxu0
    %224 = vmatpush.bf16.msra.mxu0 %v194
    %225 = vmatpush.bf16.msra.mxu0 %v192
    %226 = vmatpush.bf16.msra.mxu0 %v190
    %227 = vmatpush.bf16.msra.mxu0 %v188
    %228 = vmatpush.bf16.msra.mxu0 %v186
    %229 = vmatpush.bf16.msra.mxu0 %v184
    %230 = vmatpush.bf16.msra.mxu0 %v182
    %231 = vmatpush.bf16.msra.mxu0 %v180
    %232 = vmatmul.bf16.gmra.mxu0 %v108
    %v233 = vpop.f32.mrf.mxu0
    %v234 = vadd.f32 %v128, %v233
    %v235 = vpop.f32.mrf.mxu0
    %236 = vdwg.mxu0
    %v237 = vmul.f32 %v221, 0.01
    %v238 = vmul.f32 %v234, 0.01
    %v239 = vmax.f32 %v221, %v237
    %v240 = vmax.f32 %v234, %v238
    %v241 = vpack.c.bf16 %v239, %v239
    %v242 = vpack.c.bf16 %v240, %v240
    %v243 = vld [vmem:[#allocation4] sm:$0xf]
    %v244 = vld [vmem:[#allocation4 + $0x4] sm:$0xf]
    %v245 = vld [vmem:[#allocation4 + $0x8] sm:$0xf]
    %v246 = vld [vmem:[#allocation4 + $0xc] sm:$0xf]
    %v247 = vld [vmem:[#allocation4 + $0x10] sm:$0xf]
    %v248 = vld [vmem:[#allocation4 + $0x14] sm:$0xf]
    %v249 = vld [vmem:[#allocation4 + $0x18] sm:$0xf]
    %v250 = vld [vmem:[#allocation4 + $0x1c] sm:$0xf]
    %v251 = vld [vmem:[#allocation4 + $0x20] sm:$0xf]
    %v252 = vld [vmem:[#allocation4 + $0x24] sm:$0xf]
    %v253 = vld [vmem:[#allocation4 + $0x28] sm:$0xf]
    %v254 = vld [vmem:[#allocation4 + $0x2c] sm:$0xf]
    %v255 = vld [vmem:[#allocation4 + $0x30] sm:$0xf]
    %v256 = vld [vmem:[#allocation4 + $0x34] sm:$0xf]
    %v257 = vld [vmem:[#allocation4 + $0x38] sm:$0xf]
    %v258 = vld [vmem:[#allocation4 + $0x3c] sm:$0xf]
    %v259 = vld [vmem:[#allocation4 + $0x40] sm:$0xf]
    %v260 = vld [vmem:[#allocation4 + $0x44] sm:$0xf]
    %v261 = vld [vmem:[#allocation4 + $0x48] sm:$0xf]
    %v262 = vld [vmem:[#allocation4 + $0x4c] sm:$0xf]
    %v263 = vld [vmem:[#allocation4 + $0x50] sm:$0xf]
    %v264 = vld [vmem:[#allocation4 + $0x54] sm:$0xf]
    %v265 = vld [vmem:[#allocation4 + $0x58] sm:$0xf]
    %v266 = vld [vmem:[#allocation4 + $0x5c] sm:$0xf]
    %v267 = vld [vmem:[#allocation4 + $0x60] sm:$0xf]
    %v268 = vld [vmem:[#allocation4 + $0x64] sm:$0xf]
    %v269 = vld [vmem:[#allocation4 + $0x68] sm:$0xf]
    %v270 = vld [vmem:[#allocation4 + $0x6c] sm:$0xf]
    %v271 = vld [vmem:[#allocation4 + $0x70] sm:$0xf]
    %v272 = vld [vmem:[#allocation4 + $0x74] sm:$0xf]
    %v273 = vld [vmem:[#allocation4 + $0x78] sm:$0xf]
    %v274 = vld [vmem:[#allocation4 + $0x7c] sm:$0xf]
    %v275 = vld [vmem:[%s6] sm:$0x1]
    %v277 = vperm.slane %v275, 0
    %v311 = vunpack.c.l.b16 %v243
    %v312 = vunpack.c.l.b16 %v244
    %v313 = vunpack.c.l.b16 %v245
    %v314 = vunpack.c.l.b16 %v246
    %v315 = vunpack.c.l.b16 %v247
    %v316 = vunpack.c.l.b16 %v248
    %v317 = vunpack.c.l.b16 %v249
    %v318 = vunpack.c.l.b16 %v250
    %v319 = vunpack.c.l.b16 %v251
    %v320 = vunpack.c.l.b16 %v252
    %v321 = vunpack.c.l.b16 %v253
    %v322 = vunpack.c.l.b16 %v254
    %v323 = vunpack.c.l.b16 %v255
    %v324 = vunpack.c.l.b16 %v256
    %v325 = vunpack.c.l.b16 %v257
    %v326 = vunpack.c.l.b16 %v258
    %v327 = vunpack.c.l.b16 %v259
    %v328 = vunpack.c.l.b16 %v260
    %v329 = vunpack.c.l.b16 %v261
    %v330 = vunpack.c.l.b16 %v262
    %v331 = vunpack.c.l.b16 %v263
    %v332 = vunpack.c.l.b16 %v264
    %v333 = vunpack.c.l.b16 %v265
    %v334 = vunpack.c.l.b16 %v266
    %v335 = vunpack.c.l.b16 %v267
    %v336 = vunpack.c.l.b16 %v268
    %v337 = vunpack.c.l.b16 %v269
    %v338 = vunpack.c.l.b16 %v270
    %v339 = vunpack.c.l.b16 %v271
    %v340 = vunpack.c.l.b16 %v272
    %v341 = vunpack.c.l.b16 %v273
    %v342 = vunpack.c.l.b16 %v274
    %v343 = vpack.c.b16 %v312, %v311
    %v344 = vpack.c.b16 %v314, %v313
    %v345 = vpack.c.b16 %v316, %v315
    %v346 = vpack.c.b16 %v318, %v317
    %v347 = vpack.c.b16 %v320, %v319
    %v348 = vpack.c.b16 %v322, %v321
    %v349 = vpack.c.b16 %v324, %v323
    %v350 = vpack.c.b16 %v326, %v325
    %v351 = vpack.c.b16 %v328, %v327
    %v352 = vpack.c.b16 %v330, %v329
    %v353 = vpack.c.b16 %v332, %v331
    %v354 = vpack.c.b16 %v334, %v333
    %v355 = vpack.c.b16 %v336, %v335
    %v356 = vpack.c.b16 %v338, %v337
    %v357 = vpack.c.b16 %v340, %v339
    %v358 = vpack.c.b16 %v342, %v341
    %375 = vmatpush.bf16.msra.mxu0 %v350
    %376 = vmatpush.bf16.msra.mxu0 %v349
    %377 = vmatpush.bf16.msra.mxu0 %v348
    %378 = vmatpush.bf16.msra.mxu0 %v347
    %379 = vmatpush.bf16.msra.mxu0 %v346
    %380 = vmatpush.bf16.msra.mxu0 %v345
    %381 = vmatpush.bf16.msra.mxu0 %v344
    %382 = vmatpush.bf16.msra.mxu0 %v343
    %383 = vmatmul.bf16.gmra.mxu0 %v241
    %v384 = vpop.f32.mrf.mxu0
    %v385 = vadd.f32 %v277, %v384
    %v386 = vpop.f32.mrf.mxu0
    %387 = vdwg.mxu0
    %388 = vmatpush.bf16.msra.mxu0 %v358
    %389 = vmatpush.bf16.msra.mxu0 %v357
    %390 = vmatpush.bf16.msra.mxu0 %v356
    %391 = vmatpush.bf16.msra.mxu0 %v355
    %392 = vmatpush.bf16.msra.mxu0 %v354
    %393 = vmatpush.bf16.msra.mxu0 %v353
    %394 = vmatpush.bf16.msra.mxu0 %v352
    %395 = vmatpush.bf16.msra.mxu0 %v351
    %396 = vmatmul.bf16.gmra.mxu0 %v242
    %v397 = vpop.f32.mrf.mxu0
    %v398 = vadd.f32 %v385, %v397
    %v399 = vpop.f32.mrf.mxu0
    %400 = vdwg.mxu0
    %401 = vst [vmem:[%s7] sm:$0xff] %v398
    // Predicated region
    $region38: #{wpt_encoder_forward.1} parent=1 // pred_check
      _
    $region39: #{wpt_encoder_forward.1} parent=1 // pred_check_branch
      %403 = sbr.rel (0) target = $region41
    $region40: #{wpt_encoder_forward.1} parent=1 // pred_region
      _
    $region41: #{wpt_encoder_forward.1} parent=1 // pred_fallthru
      _
    // Predicated region
    $region42: #{wpt_encoder_forward.1} parent=1 // pred_check
      _
    $region43: #{wpt_encoder_forward.1} parent=1 // pred_check_branch
      %405 = sbr.rel (0) target = $region45
    $region44: #{wpt_encoder_forward.1} parent=1 // pred_region
      _
    $region45: #{wpt_encoder_forward.1} parent=1 // pred_fallthru
      _
    %406 = vsyncpa [#allocation3], 1
    %407 = vsyncpa [#allocation5], 1

</llo_original>
